<compile_context>
chip_gen: v6e
topology: v6e:2x2x1
jax: 0.10.0
libtpu: 0.0.40
codegen_flags: <defaults>
</compile_context>

<pallas_src>
import jax
import jax.numpy as jnp
from jax.experimental import pallas as pl
from jax.experimental.pallas import tpu as pltpu


def _round_up(x, m):
    return ((x + m - 1) // m) * m


# ---------------- row/col-tiled linear (x @ W + b), bf16 MXU -----------------
def _linear_kernel(x_ref, w_ref, b_ref, o_ref):
    o_ref[...] = (
        jnp.dot(x_ref[...].astype(jnp.bfloat16), w_ref[...],
                preferred_element_type=jnp.float32)
        + b_ref[...]
    )


def tiled_linear(x, w_t, b_row, *, bm=512, bn=512):
    """x: [N, K] (f32/bf16), w_t: [K, M] bf16, b_row: [1, M] f32 -> [N, M] f32."""
    N, K = x.shape
    M = w_t.shape[1]
    bm = min(bm, _round_up(N, 128))
    if M % bn != 0:
        bn = M                      # small / non-divisible M: single col tile
    Np = _round_up(N, bm)
    if Np != N:
        x = jnp.pad(x, ((0, Np - N), (0, 0)))
    out = pl.pallas_call(
        _linear_kernel,
        out_shape=jax.ShapeDtypeStruct((Np, M), jnp.float32),
        grid_spec=pltpu.PrefetchScalarGridSpec(
            num_scalar_prefetch=0,
            grid=(Np // bm, M // bn),
            in_specs=[
                pl.BlockSpec((bm, K), lambda i, j: (i, 0)),
                pl.BlockSpec((K, bn), lambda i, j: (0, j)),
                pl.BlockSpec((1, bn), lambda i, j: (0, j)),
            ],
            out_specs=pl.BlockSpec((bm, bn), lambda i, j: (i, j)),
        ),
        compiler_params=pltpu.CompilerParams(
            dimension_semantics=("parallel", "parallel"),
            vmem_limit_bytes=32 * 1024 * 1024),
    )(x, w_t, b_row)
    return out[:N]


# -------------------- fused bidirectional, time-blocked LSTM -----------------
def _bilstm_kernel(gx_ref, lens_ref, whh_ref, o_ref, h_sc, c_sc):
    """Grid = (direction d, time_block tb). TT time steps per grid step.

    gx_ref : [TT, Bp, 4Hp] f32   precomputed x @ W_ih^T + (b_ih + b_hh), this dir
    lens_ref: [Bp, 1]      int32 sequence lengths (0 for padded batch rows)
    whh_ref: [Hp, 4Hp]     bf16  pre-transposed recurrent weights, this dir
    o_ref  : [TT, Bp, Hp]  f32   hidden outputs at original time positions
    """
    d = pl.program_id(0)              # 0 = forward, 1 = backward
    tb = pl.program_id(1)
    nblk = pl.num_programs(1)
    TT = gx_ref.shape[0]
    Hp = whh_ref.shape[0]

    @pl.when(tb == 0)
    def _():
        h_sc[...] = jnp.zeros_like(h_sc)
        c_sc[...] = jnp.zeros_like(c_sc)

    lens = lens_ref[...]              # [Bp, 1] int32

    def run(reverse):
        # Block-level time reversal is done by the index_map; inside the block
        # only the (static) step order differs between directions.
        tblk = (nblk - 1 - tb) if reverse else tb
        h = h_sc[...]
        c = c_sc[...]
        for s in range(TT):           # static, fully unrolled
            local = (TT - 1 - s) if reverse else s
            abs_t = tblk * TT + local                 # scalar int32
            msk = abs_t < lens                        # [Bp, 1] bool
            gx = gx_ref[local]                        # [Bp, 4Hp], static index
            gates = gx + jnp.dot(h.astype(jnp.bfloat16), whh_ref[...],
                                 preferred_element_type=jnp.float32)
            # PyTorch gate order: i, f, g, o. Hp=128 -> lane-aligned slices.
            i_g = jax.nn.sigmoid(gates[:, 0 * Hp:1 * Hp])
            f_g = jax.nn.sigmoid(gates[:, 1 * Hp:2 * Hp])
            g_g = jnp.tanh(gates[:, 2 * Hp:3 * Hp])
            o_g = jax.nn.sigmoid(gates[:, 3 * Hp:4 * Hp])
            c_new = f_g * c + i_g * g_g
            h_new = o_g * jnp.tanh(c_new)
            # pack_padded/pad_packed semantics: freeze state past each length,
            # zero the padded outputs.
            c = jnp.where(msk, c_new, c)
            h = jnp.where(msk, h_new, h)
            o_ref[local] = jnp.where(msk, h_new, 0.0)
        h_sc[...] = h
        c_sc[...] = c

    pl.when(d == 0)(lambda: run(False))
    pl.when(d == 1)(lambda: run(True))


def bilstm(gx, lens_col, whh_t, *, tt=8):
    """gx: [Lp, Bp, 8Hp] f32, lens_col: [Bp,1] i32, whh_t: [2, Hp, 4Hp] bf16
       -> [Lp, Bp, 2Hp] f32 (forward H-half | backward H-half)."""
    Lp, Bp, H8 = gx.shape
    Hp = H8 // 8
    nblk = Lp // tt

    def t_idx(d, tb):
        # forward: block tb ; backward: block nblk-1-tb (reversal via index_map)
        return (1 - d) * tb + d * (nblk - 1 - tb)

    return pl.pallas_call(
        _bilstm_kernel,
        out_shape=jax.ShapeDtypeStruct((Lp, Bp, 2 * Hp), jnp.float32),
        grid_spec=pltpu.PrefetchScalarGridSpec(
            num_scalar_prefetch=0,
            grid=(2, nblk),
            in_specs=[
                # direction half of gx selected by the last block index (d)
                pl.BlockSpec((tt, Bp, 4 * Hp),
                             lambda d, tb: (t_idx(d, tb), 0, d)),
                pl.BlockSpec((Bp, 1), lambda d, tb: (0, 0)),
                pl.BlockSpec((pl.Squeezed(), Hp, 4 * Hp),
                             lambda d, tb: (d, 0, 0)),
            ],
            # H-half of the output selected by the last block index (d)
            out_specs=pl.BlockSpec((tt, Bp, Hp),
                                   lambda d, tb: (t_idx(d, tb), 0, d)),
            scratch_shapes=[
                pltpu.VMEM((Bp, Hp), jnp.float32),   # h state
                pltpu.VMEM((Bp, Hp), jnp.float32),   # c state
            ],
        ),
        compiler_params=pltpu.CompilerParams(
            # direction axis independent (maps to the 2 TCs on v7x); time axis
            # carries the recurrence in VMEM scratch.
            dimension_semantics=("parallel", "arbitrary"),
            vmem_limit_bytes=32 * 1024 * 1024),
    )(gx, lens_col, whh_t)


# ------------------------- host-side weight padding --------------------------
def _pad_gate_rows(w, H, Hp):
    # w: [4H, X] -> [4Hp, X], zero-padding each of the 4 gate row-blocks.
    X = w.shape[1]
    return jnp.pad(w.reshape(4, H, X), ((0, 0), (0, Hp - H), (0, 0))
                   ).reshape(4 * Hp, X)


def _pad_gate_vec(b, H, Hp):
    return jnp.pad(b.reshape(4, H), ((0, 0), (0, Hp - H))).reshape(4 * Hp)


def _pad_whh(w, H, Hp):
    # w: [4H, H] -> [4Hp, Hp]
    return jnp.pad(_pad_gate_rows(w, H, Hp), ((0, 0), (0, Hp - H)))


# ----------------------------------- forward ---------------------------------
def bilstm_crf_forward(params, sents_tensor, lengths, *, tt=8):
    """sents_tensor: int32 [B, L] token ids, lengths: per-example lengths."""
    emb = params["embedding"]                      # [V, E]
    H = params["w_hh_f"].shape[1]
    T = params["lin_w"].shape[0]
    B, L = sents_tensor.shape

    Hp = _round_up(H, 128)                          # lane-aligned hidden dim
    Bp = _round_up(B, 8)                            # sublane-aligned batch
    Lp = _round_up(L, tt)

    # ---- fold embedding lookup + input projection:  (E @ W_in + b)(ids) ----
    w_in = jnp.concatenate(
        [_pad_gate_rows(params["w_ih_f"], H, Hp).T,
         _pad_gate_rows(params["w_ih_b"], H, Hp).T],
        axis=1).astype(jnp.bfloat16)                # [E, 8Hp]
    b_in = jnp.concatenate(
        [_pad_gate_vec(params["b_ih_f"] + params["b_hh_f"], H, Hp),
         _pad_gate_vec(params["b_ih_b"] + params["b_hh_b"], H, Hp)],
        axis=0).reshape(1, 8 * Hp)
    proj_table = tiled_linear(emb.astype(jnp.bfloat16), w_in, b_in)  # [V, 8Hp]

    # TODO(synk): the embedding row gather and the small pads stay in plain JAX
    # (no clean Pallas win for a tiny row gather).
    gx = jnp.take(proj_table, sents_tensor.T, axis=0)      # [L, B, 8Hp]
    gx = jnp.pad(gx, ((0, Lp - L), (0, Bp - B), (0, 0)))   # [Lp, Bp, 8Hp]

    lens = jnp.zeros((Bp,), jnp.int32).at[:B].set(
        jnp.asarray(lengths, jnp.int32))
    lens_col = lens.reshape(Bp, 1)

    whh_t = jnp.stack(
        [_pad_whh(params["w_hh_f"], H, Hp).T,
         _pad_whh(params["w_hh_b"], H, Hp).T],
        axis=0).astype(jnp.bfloat16)                # [2, Hp, 4Hp]

    # ---- fused bidirectional recurrence ----
    h_out = bilstm(gx, lens_col, whh_t, tt=tt)      # [Lp, Bp, 2Hp]

    # ---- linear + CRF expansion folded into ONE lane-dense tiled linear ----
    # crf[n, i*T + j] = (h[n] @ lin_w.T)[j] + lin_b[j] + transition[i, j]
    TT2 = T * T
    Tpad = _round_up(TT2, 128)
    reps = -(-Tpad // T)
    lin_w_pad = jnp.concatenate(
        [jnp.pad(params["lin_w"][:, :H].T, ((0, Hp - H), (0, 0))),
         jnp.pad(params["lin_w"][:, H:].T, ((0, Hp - H), (0, 0)))],
        axis=0)                                     # [2Hp, T]
    w_tiled = jnp.tile(lin_w_pad, (1, reps))[:, :Tpad].astype(jnp.bfloat16)
    b_tiled = jnp.tile(params["lin_b"], reps)[:Tpad]
    tr_flat = jnp.pad(params["transition"].reshape(-1), (0, Tpad - TT2))
    bias_row = (b_tiled + tr_flat).reshape(1, Tpad)

    flat = h_out.reshape(Lp * Bp, 2 * Hp)
    crf_full = tiled_linear(flat, w_tiled, bias_row)        # [Lp*Bp, Tpad]
    crf = crf_full.reshape(Lp, Bp, Tpad)[:L, :B, :TT2].reshape(L, B, T, T)
    return jnp.transpose(crf, (1, 0, 2, 3))                 # [B, L, T, T]


# -------------------------------- params init --------------------------------
def init_params(key, vocab_size, emb_size, hidden_size, out_size):
    ks = jax.random.split(key, 12)
    s = 1.0 / float(hidden_size) ** 0.5
    s2 = 1.0 / float(2 * hidden_size) ** 0.5

    def u(k, shape, scale):
        return jax.random.uniform(k, shape, jnp.float32, -scale, scale)

    return {
        "embedding": jax.random.normal(ks[0], (vocab_size, emb_size),
                                       jnp.float32),
        "w_ih_f": u(ks[1], (4 * hidden_size, emb_size), s),
        "w_hh_f": u(ks[2], (4 * hidden_size, hidden_size), s),
        "b_ih_f": u(ks[3], (4 * hidden_size,), s),
        "b_hh_f": u(ks[4], (4 * hidden_size,), s),
        "w_ih_b": u(ks[5], (4 * hidden_size, emb_size), s),
        "w_hh_b": u(ks[6], (4 * hidden_size, hidden_size), s),
        "b_ih_b": u(ks[7], (4 * hidden_size,), s),
        "b_hh_b": u(ks[8], (4 * hidden_size,), s),
        "lin_w": u(ks[9], (out_size, 2 * hidden_size), s2),
        "lin_b": u(ks[10], (out_size,), s2),
        # nn.Parameter(torch.ones(T, T) / T)
        "transition": jnp.ones((out_size, out_size), jnp.float32) / out_size,
    }


if __name__ == "__main__":
    vocab_size, emb_size, hidden_size, out_size = 50, 16, 32, 8
    batch, seq_len = 2, 8
    lengths = [8, 6]   # sorted descending, as pack_padded_sequence requires

    key = jax.random.PRNGKey(0)
    kp, kd = jax.random.split(key)
    params = init_params(kp, vocab_size, emb_size, hidden_size, out_size)
    sents = jax.random.randint(kd, (batch, seq_len), 0, vocab_size,
                               dtype=jnp.int32)

    crf_scores = bilstm_crf_forward(params, sents, lengths)
    jax.block_until_ready(crf_scores)
    assert crf_scores.shape == (batch, seq_len, out_size, out_size)
    assert crf_scores.dtype == jnp.float32
    assert bool(jnp.all(jnp.isfinite(crf_scores)))
    print("KERNEL_OK")
</pallas_src>

<mosaic_0001>
module attributes {stable_mosaic.version = 11 : i64} {
  func.func @_linear_kernel(%arg0: i32, %arg1: i32, %arg2: memref<128x16xbf16, #tpu.memory_space<vmem>>, %arg3: memref<16x512xbf16, #tpu.memory_space<vmem>>, %arg4: memref<1x512xf32, #tpu.memory_space<vmem>>, %arg5: memref<128x512xf32, #tpu.memory_space<vmem>>) attributes {dimension_semantics = [#tpu.dimension_semantics<parallel>, #tpu.dimension_semantics<parallel>], iteration_bounds = array<i64: 1, 2>, scalar_prefetch = 0 : i64, scratch_operands = 0 : i64, tpu.core_type = #tpu.core_type<tc>, window_params = [{transform_indices = @transform_0, window_bounds = array<i64: 128, 16>}, {transform_indices = @transform_1, window_bounds = array<i64: 16, 512>}, {transform_indices = @transform_2, window_bounds = array<i64: 1, 512>}, {transform_indices = @transform_3, window_bounds = array<i64: 128, 512>}]} {
    %c0 = arith.constant 0 : index
    %c0_0 = arith.constant 0 : index
    %0 = vector.load %arg2[%c0, %c0_0] : memref<128x16xbf16, #tpu.memory_space<vmem>>, vector<128x16xbf16>
    %c0_1 = arith.constant 0 : index
    %c0_2 = arith.constant 0 : index
    %1 = vector.load %arg3[%c0_1, %c0_2] : memref<16x512xbf16, #tpu.memory_space<vmem>>, vector<16x512xbf16>
    %cst = arith.constant dense<0.000000e+00> : vector<128x512xf32>
    %2 = tpu.matmul %0, %1, %cst {dimension_numbers = #tpu.dot_dimension_numbers<[1], [0], [0], [1], [0, 0, 1, 1], [], []>} : vector<128x16xbf16>, vector<16x512xbf16>, vector<128x512xf32> -> vector<128x512xf32>
    %c0_3 = arith.constant 0 : index
    %c0_4 = arith.constant 0 : index
    %3 = vector.load %arg4[%c0_3, %c0_4] : memref<1x512xf32, #tpu.memory_space<vmem>>, vector<1x512xf32>
    %4 = vector.broadcast %3 : vector<1x512xf32> to vector<128x512xf32>
    %5 = arith.addf %2, %4 : vector<128x512xf32>
    %c0_5 = arith.constant 0 : index
    %c0_6 = arith.constant 0 : index
    %6 = vector.load %arg5[%c0_5, %c0_6] : memref<128x512xf32, #tpu.memory_space<vmem>>, vector<128x512xf32>
    tpu.vector_store %arg5[%c0_5, %c0_6], %5 {strides = array<i32>} : memref<128x512xf32, #tpu.memory_space<vmem>>, vector<128x512xf32>,
    return
  }
  func.func @transform_0(%arg0: i32, %arg1: i32) -> (i32, i32) {
    %c0_i32 = arith.constant 0 : i32
    %c0_i32_0 = arith.constant 0 : i32
    return %arg0, %c0_i32 : i32, i32
  }
  func.func @transform_1(%arg0: i32, %arg1: i32) -> (i32, i32) {
    %c0_i32 = arith.constant 0 : i32
    %c0_i32_0 = arith.constant 0 : i32
    return %c0_i32, %arg1 : i32, i32
  }
  func.func @transform_2(%arg0: i32, %arg1: i32) -> (i32, i32) {
    %c0_i32 = arith.constant 0 : i32
    %c0_i32_0 = arith.constant 0 : i32
    return %c0_i32, %arg1 : i32, i32
  }
  func.func @transform_3(%arg0: i32, %arg1: i32) -> (i32, i32) {
    %c0_i32 = arith.constant 0 : i32
    return %arg0, %arg1 : i32, i32
  }
}

</mosaic_0001>

<llo_original>
// kernel: tpu_custom_call.1
$region0: #{tpu_custom_call.1}
  #allocation0 [shape = 'u32[]', space=smem, size = 0x4, offset = 0x4, fixed_abs, tag = 'smem constant byte address 0x4 - core index']
  #allocation1 [shape = 'u32[144,128]{1,0:T(1,128)}', space=vmem, size = 0x12000, scoped, tag = 'internal scratch']
  %s0 = inlined_call_operand.vmem [shape: bf16[128,16], index: 0, kind: input, shape index: {}]
  %s1 = inlined_call_operand.vmem [shape: bf16[16,1024], index: 1, kind: input, shape index: {}]
  %s2 = inlined_call_operand.vmem [shape: f32[1,1024], index: 2, kind: input, shape index: {}]
  %s3 = inlined_call_operand.hbm [shape: f32[128,1024], index: 3, kind: output, shape index: {}]
  %s4 = sld [smem:[#allocation0]]
  $region68: #{tpu_custom_call.1} parent=0
    _
  %s6 = ssub.s32 1, %s4
  %s7 = scalar_select 0, %s6, %s4
  $region1: #{tpu_custom_call.1} parent=0
    #allocation2 [shape = 'u8[32768]{0}', space=vmem, size = 0x8000, scoped, tag = 'input window, operand 1']
    #allocation3 [shape = 'u8[524288]{0}', space=vmem, size = 0x80000, scoped, tag = 'output window, operand 0']
    #allocation4 [shape = 's32[2]{0}', space=sflag, size = 0x8, scoped, tag = 'scoped memory for tpu_custom_call.1']
    %8 = vsyncpa [#allocation4], 0
    %s9 = scalar_lea.sflag [#allocation4], 1
    %10 = vsyncpa %s9, 0
    loop: start=0, step=1, limit=4
    $region2: #{tpu_custom_call.1} parent=1 // loop_pre_header
      _
    $region3: #{tpu_custom_call.1} parent=1 // loop_header
      %s12 = sphi 0, %s16
      %p13 = scmp.ge.s32.totalorder %s12, 4
      %s19 = sphi 0, %s31
      %s20 = sphi 0, %s27
      %s21 = sphi 0, %s19
      %s22 = sphi 0, %s20
      %s23 = sphi 0, %s21
      %s24 = sphi 0, %s22
      %s34 = sphi 0, %s36
      %s37 = sphi 0, %s34
      %s38 = sphi 0, %s37
      %s54 = sphi 0, %s38
      %s60 = sphi 0, %s62
      %s63 = sphi 0, %s60
      %s64 = sphi 0, %s63
      %s80 = sphi 0, %s64
      %s86 = sphi 0, %s88
      %s89 = sphi 0, %s86
      %s90 = sphi 0, %s89
      %s106 = sphi 0, %s90
      %s114 = sphi 0, %s116
      %s117 = sphi 0, %s114
      %s118 = sphi 0, %s117
      %s134 = sphi 0, %s118
    $region4: #{tpu_custom_call.1} parent=1 // loop_header_branch
      %15 = sbr.rel (%p13) target = $region8
    $region5: #{tpu_custom_call.1} parent=1 // loop_body
      %s17 = ssub.s32 %s12, 1
      %s18 = ssub.s32 %s12, 2
      %s25 = sadd.s32 1, %s20
      %p26 = scmp.ge.s32.totalorder %s25, 2
      %s27 = scalar_select %p26, 0, %s25
      %s28 = sadd.s32 1, %s19
      %s29 = scalar_select %p26, %s28, %s19
      %p30 = scmp.ge.s32.totalorder %s29, 1
      %s31 = scalar_select %p30, 0, %s29
      %s32 = ssub.s32 %s19, %s31
      %p33 = scmp.eq.s32.totalorder %s32, 0
      %s35 = sadd.s32 %s34, 1
      %s36 = scalar_select %p33, %s34, %s35
      %p39 = pneg %p33
      %p40 = scmp.eq.s32.totalorder %s12, 1
      %p41 = por %p39, %p40
      %p42 = scmp.ne.s32.totalorder %s34, %s37
      %p43 = scmp.eq.s32.totalorder %s12, 0
      %p44 = por %p42, %p43
      %p45 = scmp.ne.s32.totalorder %s34, %s37
      %p46 = scmp.eq.s32.totalorder %s17, 1
      %p47 = por %p45, %p46
      %p48 = scmp.ne.s32.totalorder %s37, %s38
      %p49 = scmp.eq.s32.totalorder %s17, 0
      %p50 = por %p48, %p49
      %p51 = scmp.ne.s32.totalorder %s37, %s38
      %p52 = scmp.eq.s32.totalorder %s18, 1
      %p53 = por %p51, %p52
      %p55 = scmp.ne.s32.totalorder %s38, %s54
      %p56 = scmp.eq.s32.totalorder %s18, 0
      %p57 = por %p55, %p56
      %s58 = ssub.s32 %s20, %s27
      %p59 = scmp.eq.s32.totalorder %s58, 0
      %s61 = sadd.s32 %s60, 1
      %s62 = scalar_select %p59, %s60, %s61
      %p65 = pneg %p59
      %p66 = scmp.eq.s32.totalorder %s12, 1
      %p67 = por %p65, %p66
      %p68 = scmp.ne.s32.totalorder %s60, %s63
      %p69 = scmp.eq.s32.totalorder %s12, 0
      %p70 = por %p68, %p69
      %p71 = scmp.ne.s32.totalorder %s60, %s63
      %p72 = scmp.eq.s32.totalorder %s17, 1
      %p73 = por %p71, %p72
      %p74 = scmp.ne.s32.totalorder %s63, %s64
      %p75 = scmp.eq.s32.totalorder %s17, 0
      %p76 = por %p74, %p75
      %p77 = scmp.ne.s32.totalorder %s63, %s64
      %p78 = scmp.eq.s32.totalorder %s18, 1
      %p79 = por %p77, %p78
      %p81 = scmp.ne.s32.totalorder %s64, %s80
      %p82 = scmp.eq.s32.totalorder %s18, 0
      %p83 = por %p81, %p82
      %s84 = ssub.s32 %s20, %s27
      %p85 = scmp.eq.s32.totalorder %s84, 0
      %s87 = sadd.s32 %s86, 1
      %s88 = scalar_select %p85, %s86, %s87
      %p91 = pneg %p85
      %p92 = scmp.eq.s32.totalorder %s12, 1
      %p93 = por %p91, %p92
      %p94 = scmp.ne.s32.totalorder %s86, %s89
      %p95 = scmp.eq.s32.totalorder %s12, 0
      %p96 = por %p94, %p95
      %p97 = scmp.ne.s32.totalorder %s86, %s89
      %p98 = scmp.eq.s32.totalorder %s17, 1
      %p99 = por %p97, %p98
      %p100 = scmp.ne.s32.totalorder %s89, %s90
      %p101 = scmp.eq.s32.totalorder %s17, 0
      %p102 = por %p100, %p101
      %p103 = scmp.ne.s32.totalorder %s89, %s90
      %p104 = scmp.eq.s32.totalorder %s18, 1
      %p105 = por %p103, %p104
      %p107 = scmp.ne.s32.totalorder %s90, %s106
      %p108 = scmp.eq.s32.totalorder %s18, 0
      %p109 = por %p107, %p108
      %s110 = ssub.s32 %s19, %s31
      %s111 = ssub.s32 %s20, %s27
      %s112 = sor.u32 %s110, %s111
      %p113 = scmp.eq.s32.totalorder %s112, 0
      %s115 = sadd.s32 %s114, 1
      %s116 = scalar_select %p113, %s114, %s115
      %p119 = pneg %p113
      %p120 = scmp.eq.s32.totalorder %s12, 1
      %p121 = por %p119, %p120
      %p122 = scmp.ne.s32.totalorder %s114, %s117
      %p123 = scmp.eq.s32.totalorder %s12, 0
      %p124 = por %p122, %p123
      %p125 = scmp.ne.s32.totalorder %s114, %s117
      %p126 = scmp.eq.s32.totalorder %s17, 1
      %p127 = por %p125, %p126
      %p128 = scmp.ne.s32.totalorder %s117, %s118
      %p129 = scmp.eq.s32.totalorder %s17, 0
      %p130 = por %p128, %p129
      %p131 = scmp.ne.s32.totalorder %s117, %s118
      %p132 = scmp.eq.s32.totalorder %s18, 1
      %p133 = por %p131, %p132
      %p135 = scmp.ne.s32.totalorder %s118, %s134
      %p136 = scmp.eq.s32.totalorder %s18, 0
      %p137 = por %p135, %p136
      %p138 = scmp.le.s32.totalorder 1, %s12
      %p139 = scmp.lt.s32.totalorder %s12, 3
      %p140 = pnand %p138, %p139
      %p141 = pneg %p140
      // Predicated region
      $region9: #{tpu_custom_call.1} parent=5 // pred_check
        _
      $region10: #{tpu_custom_call.1} parent=5 // pred_check_branch
        %143 = sbr.rel (%p140) target = $region12
      $region11: #{tpu_custom_call.1} parent=5 // pred_region
        %s144 = ssub.s32 %s12, 1
        // Predicated region
        $region13: #{tpu_custom_call.1} parent=11 // pred_check
          %p145 = pneg %p50
        $region14: #{tpu_custom_call.1} parent=11 // pred_check_branch
          %147 = sbr.rel (%p145) target = $region16
        $region15: #{tpu_custom_call.1} parent=11 // pred_region
          %s148 = smul.u32 16, %s21
          %p149 = scmp.lt.s32.totalorder %s148, 15
          %s150 = scalar_select %p149, %s148, 15
          %s151 = smul.addr %s150, 4
          %s152 = scalar_lea.vmem %s0, %s151
          %s153 = smul.u32 16, %s21
        $region16: #{tpu_custom_call.1} parent=11 // pred_fallthru
          _
      $region12: #{tpu_custom_call.1} parent=5 // pred_fallthru
        _
      %p154 = scmp.lt.s32.totalorder %s12, 2
      // Predicated region
      $region17: #{tpu_custom_call.1} parent=5 // pred_check
        %p155 = pneg %p154
      $region18: #{tpu_custom_call.1} parent=5 // pred_check_branch
        %157 = sbr.rel (%p155) target = $region20
      $region19: #{tpu_custom_call.1} parent=5 // pred_region
        // Predicated region
        $region21: #{tpu_custom_call.1} parent=19 // pred_check
          %p158 = pneg %p70
        $region22: #{tpu_custom_call.1} parent=19 // pred_check_branch
          %160 = sbr.rel (%p158) target = $region24
        $region23: #{tpu_custom_call.1} parent=19 // pred_region
          %s161 = sand.u32 %s60, 1
          %s162 = sand.u32 %s60, 1
          %s163 = smul.addr %s162, 32
          %s164 = scalar_lea.vmem [#allocation2], %s163
          %s165 = smul.u32 4, %s20
          %s166 = smul.addr %s165, 4
          %s167 = scalar_lea.vmem %s1, %s166
          // Predicated region
          $region25: #{tpu_custom_call.1} parent=23 // pred_check
            _
          $region26: #{tpu_custom_call.1} parent=23 // pred_check_branch
            %169 = sbr.rel (0) target = $region28
          $region27: #{tpu_custom_call.1} parent=23 // pred_region
            // Predicated region
            $region29: #{tpu_custom_call.1} parent=27 // pred_check
              _
            $region30: #{tpu_custom_call.1} parent=27 // pred_check_branch
              %171 = sbr.rel (0) target = $region32
            $region31: #{tpu_custom_call.1} parent=27 // pred_region
              loop: start=0, step=1, limit=1
              $region33: #{tpu_custom_call.1} parent=31 // loop_pre_header
                _
              $region34: #{tpu_custom_call.1} parent=31 // loop_header
                %s173 = sphi 0, %s177
                %p174 = scmp.ge.s32.totalorder %s173, 1
                %s178 = sphi %s167, %s167
                %s179 = sphi %s164, %s164
              $region35: #{tpu_custom_call.1} parent=31 // loop_header_branch
                %176 = sbr.rel (%p174) target = $region39
              $region36: #{tpu_custom_call.1} parent=31 // loop_body
                %v180 = vld [vmem:[%s178] sm:$0xff]
                %181 = vst [vmem:[%s179] sm:$0xff] %v180
                %v182 = vld [vmem:[%s178 + $0x8] sm:$0xff]
                %183 = vst [vmem:[%s179 + $0x8] sm:$0xff] %v182
                %v184 = vld [vmem:[%s178 + $0x20] sm:$0xff]
                %185 = vst [vmem:[%s179 + $0x10] sm:$0xff] %v184
                %v186 = vld [vmem:[%s178 + $0x28] sm:$0xff]
                %187 = vst [vmem:[%s179 + $0x18] sm:$0xff] %v186
              $region37: #{tpu_custom_call.1} parent=31 // loop_footer
                %s177 = sadd.s32 1, %s173
              $region38: #{tpu_custom_call.1} parent=31 // loop_footer_branch
                %172 = sbr.rel target = $region34
              $region39: #{tpu_custom_call.1} parent=31 // loop_exit
                _
            $region32: #{tpu_custom_call.1} parent=27 // pred_fallthru
              _
            // Predicated region
            $region40: #{tpu_custom_call.1} parent=27 // pred_check
              _
            $region41: #{tpu_custom_call.1} parent=27 // pred_check_branch
              %189 = sbr.rel target = $region43
            $region42: #{tpu_custom_call.1} parent=27 // pred_region
              _
            $region43: #{tpu_custom_call.1} parent=27 // pred_fallthru
              _
          $region28: #{tpu_custom_call.1} parent=23 // pred_fallthru
            _
          %190 = vnop
        $region24: #{tpu_custom_call.1} parent=19 // pred_fallthru
          _
        // Predicated region
        $region44: #{tpu_custom_call.1} parent=19 // pred_check
          %p191 = pneg %p96
        $region45: #{tpu_custom_call.1} parent=19 // pred_check_branch
          %193 = sbr.rel (%p191) target = $region47
        $region46: #{tpu_custom_call.1} parent=19 // pred_region
          %s194 = smul.u32 4, %s20
          %p195 = scmp.lt.s32.totalorder %s194, 7
          %s196 = scalar_select %p195, %s194, 7
          %s197 = scalar_lea.vmem %s2, %s196
          %s198 = smul.u32 4, %s20
        $region47: #{tpu_custom_call.1} parent=19 // pred_fallthru
          _
      $region20: #{tpu_custom_call.1} parent=5 // pred_fallthru
        _
      %p199 = scmp.le.s32.totalorder 1, %s12
      %p200 = scmp.lt.s32.totalorder %s12, 3
      %p201 = pnand %p199, %p200
      %p202 = pneg %p201
      // Predicated region
      $region48: #{tpu_custom_call.1} parent=5 // pred_check
        _
      $region49: #{tpu_custom_call.1} parent=5 // pred_check_branch
        %204 = sbr.rel (%p201) target = $region51
      $region50: #{tpu_custom_call.1} parent=5 // pred_region
        %s205 = ssub.s32 %s12, 1
        %s206 = sand.u32 %s63, 1
        %s207 = sand.u32 %s63, 1
        %s208 = smul.addr %s207, 32
        %s209 = scalar_lea.vmem [#allocation2], %s208
        // Predicated region
        $region52: #{tpu_custom_call.1} parent=50 // pred_check
          %p210 = pneg %p76
        $region53: #{tpu_custom_call.1} parent=50 // pred_check_branch
          %212 = sbr.rel (%p210) target = $region55
        $region54: #{tpu_custom_call.1} parent=50 // pred_region
          _
        $region55: #{tpu_custom_call.1} parent=50 // pred_fallthru
          _
        %s213 = smul.u32 16, %s21
        %p214 = scmp.lt.s32.totalorder %s213, 15
        %s215 = scalar_select %p214, %s213, 15
        %s216 = smul.addr %s215, 4
        %s217 = scalar_lea.vmem %s0, %s216
        %p218 = pneg %p50
        %p219 = pneg %p47
        %s220 = sand.u32 %s63, 1
        %s221 = sand.u32 %s63, 1
        %s222 = smul.addr %s221, 32
        %s223 = scalar_lea.vmem [#allocation2], %s222
        %p224 = pneg %p76
        %p225 = pneg %p73
        %s226 = smul.u32 4, %s22
        %p227 = scmp.lt.s32.totalorder %s226, 7
        %s228 = scalar_select %p227, %s226, 7
        %s229 = scalar_lea.vmem %s2, %s228
        %p230 = pneg %p102
        %p231 = pneg %p99
        %p232 = pneg %p130
        %p233 = pneg %p127
        %s234 = sand.u32 %s117, 1
        %s235 = scalar_lea.sflag [#allocation4], %s234
        %s236 = sand.u32 %s117, 1
        %s237 = smul.addr %s236, 512
        %s238 = scalar_lea.vmem [#allocation3], %s237
        %s239 = smul.u32 16, %s21
        %p240 = scmp.lt.s32.totalorder %s239, 15
        %s241 = scalar_select %p240, %s239, 15
        %s242 = smul.addr %s241, 4
        %s243 = scalar_lea.vmem %s0, %s242
        %s244 = smul.u32 16, %s21
        %s245 = smul.u32 4, %s22
        %s246 = smul.u32 4, %s22
        %p247 = scmp.lt.s32.totalorder %s246, 7
        %s248 = scalar_select %p247, %s246, 7
        %s249 = scalar_lea.vmem %s2, %s248
        %s250 = smul.u32 4, %s22
        %s251 = smul.u32 16, %s21
        %s252 = smul.u32 4, %s22
        %v254 = vld [vmem:[%s243] sm:$0xf]
        %v255 = vld [vmem:[%s243 + $0x4] sm:$0xf]
        %v256 = vld [vmem:[%s243 + $0x8] sm:$0xf]
        %v257 = vld [vmem:[%s243 + $0xc] sm:$0xf]
        %v258 = vld [vmem:[%s243 + $0x10] sm:$0xf]
        %v259 = vld [vmem:[%s243 + $0x14] sm:$0xf]
        %v260 = vld [vmem:[%s243 + $0x18] sm:$0xf]
        %v261 = vld [vmem:[%s243 + $0x1c] sm:$0xf]
        %v262 = vld [vmem:[%s243 + $0x20] sm:$0xf]
        %v263 = vld [vmem:[%s243 + $0x24] sm:$0xf]
        %v264 = vld [vmem:[%s243 + $0x28] sm:$0xf]
        %v265 = vld [vmem:[%s243 + $0x2c] sm:$0xf]
        %v266 = vld [vmem:[%s243 + $0x30] sm:$0xf]
        %v267 = vld [vmem:[%s243 + $0x34] sm:$0xf]
        %v268 = vld [vmem:[%s243 + $0x38] sm:$0xf]
        %v269 = vld [vmem:[%s243 + $0x3c] sm:$0xf]
        %v270 = vld [vmem:[%s209] sm:$0xff]
        %v271 = vld [vmem:[%s209 + $0x8] sm:$0xff]
        %v272 = vld [vmem:[%s209 + $0x10] sm:$0xff]
        %v273 = vld [vmem:[%s209 + $0x18] sm:$0xff]
        %v274 = vld [vmem:[%s249] sm:$0xf]
        %v276 = vlaneseq
        %v277 = vshrl.u32 %v276, 7
        %v278 = vsub.s32 0, %v277
        %v279 = vrot.slane %v274, %v278
        %v280 = vlaneseq
        %v281 = vshrl.u32 %v280, 7
        %v282 = vsub.s32 1, %v281
        %v283 = vrot.slane %v274, %v282
        %v284 = vlaneseq
        %v285 = vshrl.u32 %v284, 7
        %v286 = vsub.s32 2, %v285
        %v287 = vrot.slane %v274, %v286
        %v288 = vlaneseq
        %v289 = vshrl.u32 %v288, 7
        %v290 = vsub.s32 3, %v289
        %v291 = vrot.slane %v274, %v290
        %v312 = vunpack.c.l.b16 %v254
        %v313 = vunpack.c.l.b16 %v255
        %v314 = vunpack.c.l.b16 %v256
        %v315 = vunpack.c.l.b16 %v257
        %v316 = vunpack.c.l.b16 %v258
        %v317 = vunpack.c.l.b16 %v259
        %v318 = vunpack.c.l.b16 %v260
        %v319 = vunpack.c.l.b16 %v261
        %v320 = vunpack.c.l.b16 %v262
        %v321 = vunpack.c.l.b16 %v263
        %v322 = vunpack.c.l.b16 %v264
        %v323 = vunpack.c.l.b16 %v265
        %v324 = vunpack.c.l.b16 %v266
        %v325 = vunpack.c.l.b16 %v267
        %v326 = vunpack.c.l.b16 %v268
        %v327 = vunpack.c.l.b16 %v269
        %v328 = vpack.c.b16 %v313, %v312
        %v329 = vpack.c.b16 %v315, %v314
        %v330 = vpack.c.b16 %v317, %v316
        %v331 = vpack.c.b16 %v319, %v318
        %v332 = vpack.c.b16 %v321, %v320
        %v333 = vpack.c.b16 %v323, %v322
        %v334 = vpack.c.b16 %v325, %v324
        %v335 = vpack.c.b16 %v327, %v326
        %v340 = vunpack.c.l.b16 %v270
        %v341 = vunpack.c.h.b16 %v270
        %v342 = vunpack.c.l.b16 %v271
        %v343 = vunpack.c.h.b16 %v271
        %v344 = vunpack.c.l.b16 %v272
        %v345 = vunpack.c.h.b16 %v272
        %v346 = vunpack.c.l.b16 %v273
        %v347 = vunpack.c.h.b16 %v273
        %v348 = vpack.c.b16 %v344, %v340
        %v349 = vpack.c.b16 %v345, %v341
        %v350 = vpack.c.b16 %v346, %v342
        %v351 = vpack.c.b16 %v347, %v343
        %vm356 = vcmask 130048
        %v358 = vsel %vm356, %v328, 0
        %v361 = vsel %vm356, %v329, 0
        %v364 = vsel %vm356, %v330, 0
        %v367 = vsel %vm356, %v331, 0
        %v370 = vsel %vm356, %v332, 0
        %v373 = vsel %vm356, %v333, 0
        %v376 = vsel %vm356, %v334, 0
        %v379 = vsel %vm356, %v335, 0
        %381 = vmatprep.subr.bf16.mxu0 0
        %382 = vmatpush1.bf16.msra.mxu0 0
        %383 = vmatprep.subr.bf16.mxu0 0
        %384 = vmatpush1.bf16.msra.mxu0 0
        %385 = vmatprep.subr.bf16.mxu0 0
        %386 = vmatpush1.bf16.msra.mxu0 0
        %387 = vmatprep.subr.bf16.mxu0 0
        %388 = vmatpush1.bf16.msra.mxu0 0
        %389 = vmatprep.subr.bf16.mxu0 0
        %390 = vmatpush1.bf16.msra.mxu0 0
        %391 = vmatprep.subr.bf16.mxu0 0
        %392 = vmatpush1.bf16.msra.mxu0 0
        %393 = vmatprep.subr.bf16.mxu0 0
        %394 = vmatpush1.bf16.msra.mxu0 0
        %395 = vmatprep.subr.bf16.mxu0 %v349
        %396 = vmatpush1.bf16.msra.mxu0 %v348
        %397 = vmatprep.subr.bf16.mxu0 0
        %398 = vmatpush2.bf16.msra.mxu0 0
        %399 = vmatprep.subr.bf16.mxu0 0
        %400 = vmatpush2.bf16.msra.mxu0 0
        %401 = vmatprep.subr.bf16.mxu0 0
        %402 = vmatpush2.bf16.msra.mxu0 0
        %403 = vmatprep.subr.bf16.mxu0 0
        %404 = vmatpush2.bf16.msra.mxu0 0
        %405 = vmatprep.subr.bf16.mxu0 0
        %406 = vmatpush2.bf16.msra.mxu0 0
        %407 = vmatprep.subr.bf16.mxu0 0
        %408 = vmatpush2.bf16.msra.mxu0 0
        %409 = vmatprep.subr.bf16.mxu0 0
        %410 = vmatpush2.bf16.msra.mxu0 0
        %411 = vmatprep.subr.bf16.mxu0 0
        %412 = vmatpush2.bf16.msra.mxu0 0
        %413 = vmatprep.mubr.bf16.mxu0 0
        %414 = vmatmul.mubr.bf16.gmra.mxu0 %v358
        %v415 = vpop.f32.mrf.mxu0
        %v416 = vadd.f32 %v279, %v415
        %v417 = vpop.f32.mrf.mxu0
        %v418 = vadd.f32 %v283, %v417
        %v419 = vpop.f32.mrf.mxu0
        %v420 = vadd.f32 %v279, %v419
        %v421 = vpop.f32.mrf.mxu0
        %v422 = vadd.f32 %v283, %v421
        %423 = vmatprep.mubr.bf16.mxu0 0
        %424 = vmatmul.mubr.bf16.gmra.mxu0 %v361
        %v425 = vpop.f32.mrf.mxu0
        %v426 = vadd.f32 %v279, %v425
        %v427 = vpop.f32.mrf.mxu0
        %v428 = vadd.f32 %v283, %v427
        %v429 = vpop.f32.mrf.mxu0
        %v430 = vadd.f32 %v279, %v429
        %v431 = vpop.f32.mrf.mxu0
        %v432 = vadd.f32 %v283, %v431
        %433 = vmatprep.mubr.bf16.mxu0 0
        %434 = vmatmul.mubr.bf16.gmra.mxu0 %v364
        %v435 = vpop.f32.mrf.mxu0
        %v436 = vadd.f32 %v279, %v435
        %v437 = vpop.f32.mrf.mxu0
        %v438 = vadd.f32 %v283, %v437
        %v439 = vpop.f32.mrf.mxu0
        %v440 = vadd.f32 %v279, %v439
        %v441 = vpop.f32.mrf.mxu0
        %v442 = vadd.f32 %v283, %v441
        %443 = vmatprep.mubr.bf16.mxu0 0
        %444 = vmatmul.mubr.bf16.gmra.mxu0 %v367
        %v445 = vpop.f32.mrf.mxu0
        %v446 = vadd.f32 %v279, %v445
        %v447 = vpop.f32.mrf.mxu0
        %v448 = vadd.f32 %v283, %v447
        %v449 = vpop.f32.mrf.mxu0
        %v450 = vadd.f32 %v279, %v449
        %v451 = vpop.f32.mrf.mxu0
        %v452 = vadd.f32 %v283, %v451
        %453 = vmatprep.mubr.bf16.mxu0 0
        %454 = vmatmul.mubr.bf16.gmra.mxu0 %v370
        %v455 = vpop.f32.mrf.mxu0
        %v456 = vadd.f32 %v279, %v455
        %v457 = vpop.f32.mrf.mxu0
        %v458 = vadd.f32 %v283, %v457
        %v459 = vpop.f32.mrf.mxu0
        %v460 = vadd.f32 %v279, %v459
        %v461 = vpop.f32.mrf.mxu0
        %v462 = vadd.f32 %v283, %v461
        %463 = vmatprep.mubr.bf16.mxu0 0
        %464 = vmatmul.mubr.bf16.gmra.mxu0 %v373
        %v465 = vpop.f32.mrf.mxu0
        %v466 = vadd.f32 %v279, %v465
        %v467 = vpop.f32.mrf.mxu0
        %v468 = vadd.f32 %v283, %v467
        %v469 = vpop.f32.mrf.mxu0
        %v470 = vadd.f32 %v279, %v469
        %v471 = vpop.f32.mrf.mxu0
        %v472 = vadd.f32 %v283, %v471
        %473 = vmatprep.mubr.bf16.mxu0 0
        %474 = vmatmul.mubr.bf16.gmra.mxu0 %v376
        %v475 = vpop.f32.mrf.mxu0
        %v476 = vadd.f32 %v279, %v475
        %v477 = vpop.f32.mrf.mxu0
        %v478 = vadd.f32 %v283, %v477
        %v479 = vpop.f32.mrf.mxu0
        %v480 = vadd.f32 %v279, %v479
        %v481 = vpop.f32.mrf.mxu0
        %v482 = vadd.f32 %v283, %v481
        %483 = vmatprep.mubr.bf16.mxu0 0
        %484 = vmatmul.mubr.bf16.gmra.mxu0 %v379
        %v485 = vpop.f32.mrf.mxu0
        %v486 = vadd.f32 %v279, %v485
        %v487 = vpop.f32.mrf.mxu0
        %v488 = vadd.f32 %v283, %v487
        %v489 = vpop.f32.mrf.mxu0
        %v490 = vadd.f32 %v279, %v489
        %v491 = vpop.f32.mrf.mxu0
        %v492 = vadd.f32 %v283, %v491
        %493 = vdwg.mxu0
        %494 = vmatprep.subr.bf16.mxu0 0
        %495 = vmatpush1.bf16.msra.mxu0 0
        %496 = vmatprep.subr.bf16.mxu0 0
        %497 = vmatpush1.bf16.msra.mxu0 0
        %498 = vmatprep.subr.bf16.mxu0 0
        %499 = vmatpush1.bf16.msra.mxu0 0
        %500 = vmatprep.subr.bf16.mxu0 0
        %501 = vmatpush1.bf16.msra.mxu0 0
        %502 = vmatprep.subr.bf16.mxu0 0
        %503 = vmatpush1.bf16.msra.mxu0 0
        %504 = vmatprep.subr.bf16.mxu0 0
        %505 = vmatpush1.bf16.msra.mxu0 0
        %506 = vmatprep.subr.bf16.mxu0 0
        %507 = vmatpush1.bf16.msra.mxu0 0
        %508 = vmatprep.subr.bf16.mxu0 %v351
        %509 = vmatpush1.bf16.msra.mxu0 %v350
        %510 = vmatprep.subr.bf16.mxu0 0
        %511 = vmatpush2.bf16.msra.mxu0 0
        %512 = vmatprep.subr.bf16.mxu0 0
        %513 = vmatpush2.bf16.msra.mxu0 0
        %514 = vmatprep.subr.bf16.mxu0 0
        %515 = vmatpush2.bf16.msra.mxu0 0
        %516 = vmatprep.subr.bf16.mxu0 0
        %517 = vmatpush2.bf16.msra.mxu0 0
        %518 = vmatprep.subr.bf16.mxu0 0
        %519 = vmatpush2.bf16.msra.mxu0 0
        %520 = vmatprep.subr.bf16.mxu0 0
        %521 = vmatpush2.bf16.msra.mxu0 0
        %522 = vmatprep.subr.bf16.mxu0 0
        %523 = vmatpush2.bf16.msra.mxu0 0
        %524 = vmatprep.subr.bf16.mxu0 0
        %525 = vmatpush2.bf16.msra.mxu0 0
        %526 = vmatprep.mubr.bf16.mxu0 0
        %527 = vmatmul.mubr.bf16.gmra.mxu0 %v358
        %v528 = vpop.f32.mrf.mxu0
        %v529 = vadd.f32 %v287, %v528
        %v530 = vpop.f32.mrf.mxu0
        %v531 = vadd.f32 %v291, %v530
        %v532 = vpop.f32.mrf.mxu0
        %v533 = vadd.f32 %v287, %v532
        %v534 = vpop.f32.mrf.mxu0
        %v535 = vadd.f32 %v291, %v534
        %536 = vmatprep.mubr.bf16.mxu0 0
        %537 = vmatmul.mubr.bf16.gmra.mxu0 %v361
        %v538 = vpop.f32.mrf.mxu0
        %v539 = vadd.f32 %v287, %v538
        %v540 = vpop.f32.mrf.mxu0
        %v541 = vadd.f32 %v291, %v540
        %v542 = vpop.f32.mrf.mxu0
        %v543 = vadd.f32 %v287, %v542
        %v544 = vpop.f32.mrf.mxu0
        %v545 = vadd.f32 %v291, %v544
        %546 = vmatprep.mubr.bf16.mxu0 0
        %547 = vmatmul.mubr.bf16.gmra.mxu0 %v364
        %v548 = vpop.f32.mrf.mxu0
        %v549 = vadd.f32 %v287, %v548
        %v550 = vpop.f32.mrf.mxu0
        %v551 = vadd.f32 %v291, %v550
        %v552 = vpop.f32.mrf.mxu0
        %v553 = vadd.f32 %v287, %v552
        %v554 = vpop.f32.mrf.mxu0
        %v555 = vadd.f32 %v291, %v554
        %556 = vmatprep.mubr.bf16.mxu0 0
        %557 = vmatmul.mubr.bf16.gmra.mxu0 %v367
        %v558 = vpop.f32.mrf.mxu0
        %v559 = vadd.f32 %v287, %v558
        %v560 = vpop.f32.mrf.mxu0
        %v561 = vadd.f32 %v291, %v560
        %v562 = vpop.f32.mrf.mxu0
        %v563 = vadd.f32 %v287, %v562
        %v564 = vpop.f32.mrf.mxu0
        %v565 = vadd.f32 %v291, %v564
        %566 = vmatprep.mubr.bf16.mxu0 0
        %567 = vmatmul.mubr.bf16.gmra.mxu0 %v370
        %v568 = vpop.f32.mrf.mxu0
        %v569 = vadd.f32 %v287, %v568
        %v570 = vpop.f32.mrf.mxu0
        %v571 = vadd.f32 %v291, %v570
        %v572 = vpop.f32.mrf.mxu0
        %v573 = vadd.f32 %v287, %v572
        %v574 = vpop.f32.mrf.mxu0
        %v575 = vadd.f32 %v291, %v574
        %576 = vmatprep.mubr.bf16.mxu0 0
        %577 = vmatmul.mubr.bf16.gmra.mxu0 %v373
        %v578 = vpop.f32.mrf.mxu0
        %v579 = vadd.f32 %v287, %v578
        %v580 = vpop.f32.mrf.mxu0
        %v581 = vadd.f32 %v291, %v580
        %v582 = vpop.f32.mrf.mxu0
        %v583 = vadd.f32 %v287, %v582
        %v584 = vpop.f32.mrf.mxu0
        %v585 = vadd.f32 %v291, %v584
        %586 = vmatprep.mubr.bf16.mxu0 0
        %587 = vmatmul.mubr.bf16.gmra.mxu0 %v376
        %v588 = vpop.f32.mrf.mxu0
        %v589 = vadd.f32 %v287, %v588
        %v590 = vpop.f32.mrf.mxu0
        %v591 = vadd.f32 %v291, %v590
        %v592 = vpop.f32.mrf.mxu0
        %v593 = vadd.f32 %v287, %v592
        %v594 = vpop.f32.mrf.mxu0
        %v595 = vadd.f32 %v291, %v594
        %596 = vmatprep.mubr.bf16.mxu0 0
        %597 = vmatmul.mubr.bf16.gmra.mxu0 %v379
        %v598 = vpop.f32.mrf.mxu0
        %v599 = vadd.f32 %v287, %v598
        %v600 = vpop.f32.mrf.mxu0
        %v601 = vadd.f32 %v291, %v600
        %v602 = vpop.f32.mrf.mxu0
        %v603 = vadd.f32 %v287, %v602
        %v604 = vpop.f32.mrf.mxu0
        %v605 = vadd.f32 %v291, %v604
        %606 = vdwg.mxu0
        %607 = vst [vmem:[%s238] sm:$0xff] %v416
        %608 = vst [vmem:[%s238 + $0x8] sm:$0xff] %v418
        %609 = vst [vmem:[%s238 + $0x10] sm:$0xff] %v529
        %610 = vst [vmem:[%s238 + $0x18] sm:$0xff] %v531
        %611 = vst [vmem:[%s238 + $0x20] sm:$0xff] %v420
        %612 = vst [vmem:[%s238 + $0x28] sm:$0xff] %v422
        %613 = vst [vmem:[%s238 + $0x30] sm:$0xff] %v533
        %614 = vst [vmem:[%s238 + $0x38] sm:$0xff] %v535
        %615 = vst [vmem:[%s238 + $0x40] sm:$0xff] %v426
        %616 = vst [vmem:[%s238 + $0x48] sm:$0xff] %v428
        %617 = vst [vmem:[%s238 + $0x50] sm:$0xff] %v539
        %618 = vst [vmem:[%s238 + $0x58] sm:$0xff] %v541
        %619 = vst [vmem:[%s238 + $0x60] sm:$0xff] %v430
        %620 = vst [vmem:[%s238 + $0x68] sm:$0xff] %v432
        %621 = vst [vmem:[%s238 + $0x70] sm:$0xff] %v543
        %622 = vst [vmem:[%s238 + $0x78] sm:$0xff] %v545
        %623 = vst [vmem:[%s238 + $0x80] sm:$0xff] %v436
        %624 = vst [vmem:[%s238 + $0x88] sm:$0xff] %v438
        %625 = vst [vmem:[%s238 + $0x90] sm:$0xff] %v549
        %626 = vst [vmem:[%s238 + $0x98] sm:$0xff] %v551
        %627 = vst [vmem:[%s238 + $0xa0] sm:$0xff] %v440
        %628 = vst [vmem:[%s238 + $0xa8] sm:$0xff] %v442
        %629 = vst [vmem:[%s238 + $0xb0] sm:$0xff] %v553
        %630 = vst [vmem:[%s238 + $0xb8] sm:$0xff] %v555
        %631 = vst [vmem:[%s238 + $0xc0] sm:$0xff] %v446
        %632 = vst [vmem:[%s238 + $0xc8] sm:$0xff] %v448
        %633 = vst [vmem:[%s238 + $0xd0] sm:$0xff] %v559
        %634 = vst [vmem:[%s238 + $0xd8] sm:$0xff] %v561
        %635 = vst [vmem:[%s238 + $0xe0] sm:$0xff] %v450
        %636 = vst [vmem:[%s238 + $0xe8] sm:$0xff] %v452
        %637 = vst [vmem:[%s238 + $0xf0] sm:$0xff] %v563
        %638 = vst [vmem:[%s238 + $0xf8] sm:$0xff] %v565
        %639 = vst [vmem:[%s238 + $0x100] sm:$0xff] %v456
        %640 = vst [vmem:[%s238 + $0x108] sm:$0xff] %v458
        %641 = vst [vmem:[%s238 + $0x110] sm:$0xff] %v569
        %642 = vst [vmem:[%s238 + $0x118] sm:$0xff] %v571
        %643 = vst [vmem:[%s238 + $0x120] sm:$0xff] %v460
        %644 = vst [vmem:[%s238 + $0x128] sm:$0xff] %v462
        %645 = vst [vmem:[%s238 + $0x130] sm:$0xff] %v573
        %646 = vst [vmem:[%s238 + $0x138] sm:$0xff] %v575
        %647 = vst [vmem:[%s238 + $0x140] sm:$0xff] %v466
        %648 = vst [vmem:[%s238 + $0x148] sm:$0xff] %v468
        %649 = vst [vmem:[%s238 + $0x150] sm:$0xff] %v579
        %650 = vst [vmem:[%s238 + $0x158] sm:$0xff] %v581
        %651 = vst [vmem:[%s238 + $0x160] sm:$0xff] %v470
        %652 = vst [vmem:[%s238 + $0x168] sm:$0xff] %v472
        %653 = vst [vmem:[%s238 + $0x170] sm:$0xff] %v583
        %654 = vst [vmem:[%s238 + $0x178] sm:$0xff] %v585
        %655 = vst [vmem:[%s238 + $0x180] sm:$0xff] %v476
        %656 = vst [vmem:[%s238 + $0x188] sm:$0xff] %v478
        %657 = vst [vmem:[%s238 + $0x190] sm:$0xff] %v589
        %658 = vst [vmem:[%s238 + $0x198] sm:$0xff] %v591
        %659 = vst [vmem:[%s238 + $0x1a0] sm:$0xff] %v480
        %660 = vst [vmem:[%s238 + $0x1a8] sm:$0xff] %v482
        %661 = vst [vmem:[%s238 + $0x1b0] sm:$0xff] %v593
        %662 = vst [vmem:[%s238 + $0x1b8] sm:$0xff] %v595
        %663 = vst [vmem:[%s238 + $0x1c0] sm:$0xff] %v486
        %664 = vst [vmem:[%s238 + $0x1c8] sm:$0xff] %v488
        %665 = vst [vmem:[%s238 + $0x1d0] sm:$0xff] %v599
        %666 = vst [vmem:[%s238 + $0x1d8] sm:$0xff] %v601
        %667 = vst [vmem:[%s238 + $0x1e0] sm:$0xff] %v490
        %668 = vst [vmem:[%s238 + $0x1e8] sm:$0xff] %v492
        %669 = vst [vmem:[%s238 + $0x1f0] sm:$0xff] %v603
        %670 = vst [vmem:[%s238 + $0x1f8] sm:$0xff] %v605
        %s671 = sand.u32 %s117, 1
        %s672 = scalar_lea.sflag [#allocation4], %s671
        %s673 = sand.u32 %s117, 1
        %s674 = smul.addr %s673, 512
        %s675 = scalar_lea.vmem [#allocation3], %s674
        // Predicated region
        $region56: #{tpu_custom_call.1} parent=50 // pred_check
          %p676 = pneg %p127
        $region57: #{tpu_custom_call.1} parent=50 // pred_check_branch
          %678 = sbr.rel (%p676) target = $region59
        $region58: #{tpu_custom_call.1} parent=50 // pred_region
          %s679 = smul.u32 16, %s21
          %s680 = smul.u32 4, %s22
          %s682 = ssub.s32 8192, 8192
          %683 = vsyncadd %s672, %s682
          %s684 = smul.addr %s679, 8
          %s685 = sadd.s32 %s680, %s684
          %s686 = smul.addr %s685, 128
          %s687 = scalar_lea.hbm %s3, %s686
          %s688 = sshll.u32 %s675, 4
          %s689 = int_to_ptr.vmem [resolvable:$true] %s688
          %694 = dma.vmem_to_hbm [thread:$0]  %s689, 8192, %s687, %s672, 512, 1024, 32
        $region59: #{tpu_custom_call.1} parent=50 // pred_fallthru
          _
      $region51: #{tpu_custom_call.1} parent=5 // pred_fallthru
        _
      %p695 = scmp.le.s32.totalorder 2, %s12
      // Predicated region
      $region60: #{tpu_custom_call.1} parent=5 // pred_check
        %p696 = pneg %p695
      $region61: #{tpu_custom_call.1} parent=5 // pred_check_branch
        %698 = sbr.rel (%p696) target = $region63
      $region62: #{tpu_custom_call.1} parent=5 // pred_region
        %s699 = ssub.s32 %s12, 2
        // Predicated region
        $region64: #{tpu_custom_call.1} parent=62 // pred_check
          %p700 = pneg %p133
        $region65: #{tpu_custom_call.1} parent=62 // pred_check_branch
          %702 = sbr.rel (%p700) target = $region67
        $region66: #{tpu_custom_call.1} parent=62 // pred_region
          %s703 = sand.u32 %s118, 1
          %s704 = scalar_lea.sflag [#allocation4], %s703
          %s705 = sand.u32 %s118, 1
          %s706 = smul.addr %s705, 512
          %s707 = scalar_lea.vmem [#allocation3], %s706
          %708 = dma.done %s704, 8192
        $region67: #{tpu_custom_call.1} parent=62 // pred_fallthru
          _
      $region63: #{tpu_custom_call.1} parent=5 // pred_fallthru
        _
    $region6: #{tpu_custom_call.1} parent=1 // loop_footer
      %s16 = sadd.s32 1, %s12
    $region7: #{tpu_custom_call.1} parent=1 // loop_footer_branch
      %11 = sbr.rel target = $region3
    $region8: #{tpu_custom_call.1} parent=1 // loop_exit
      _
    %709 = vsyncpa [#allocation4], 1
    %s710 = scalar_lea.sflag [#allocation4], 1
    %711 = vsyncpa %s710, 1

</llo_original>
